<compile_context>
chip_gen: v5e
topology: v5e:2x2
jax: 0.10.0
libtpu: 0.0.40
codegen_flags: <defaults>
</compile_context>

<pallas_src>
import functools
from typing import NamedTuple

import jax
import jax.numpy as jnp
from jax.experimental import pallas as pl
from jax.experimental.pallas import tpu as pltpu

BN_EPS = 1e-5


def _round_up(v, m):
    return (v + m - 1) // m * m


def _tpu_vmem_capacity_bytes():
    try:
        return int(pltpu.get_tpu_info().vmem_capacity_bytes)
    except Exception:
        return 64 << 20  # conservative default (v7x per-TensorCore VMEM)


def _tensorcores_per_chip():
    try:
        dev = jax.devices()[0]
        n = getattr(dev, "num_cores", None)
        if n:
            return int(n)
        if "v7" in str(getattr(dev, "device_kind", "")).lower():
            return 2
    except Exception:
        pass
    return 1


class FCBlockConfig(NamedTuple):
    in_features: int
    out_features: int
    k_pad: int
    n_pad: int
    tk: int
    tn: int
    num_k: int
    vmem_usable: int


class FCBlockParams(NamedTuple):
    w: jax.Array       # (k_pad, n_pad) bf16, W^T zero-padded
    b: jax.Array       # (1, n_pad) f32
    gamma: jax.Array   # (1, n_pad) f32
    beta: jax.Array    # (1, n_pad) f32


def prepare_fc_block_params(weight, bias, gamma, beta):
    """One-time pad + bf16 cast of the Linear/BN parameters (hoisted out of forward).

    weight: (N, K) float32 (PyTorch nn.Linear layout), bias/gamma/beta: (N,) float32.
    """
    n, k = weight.shape
    k_pad = _round_up(k, 128)
    n_pad = _round_up(n, 128)

    vmem_usable = _tpu_vmem_capacity_bytes() * 3 // 4
    w_budget = vmem_usable // 2  # leave room for x, the output block and epilogue temps

    # N tiling: one lane-dense tile unless the chip has 2 TensorCores (v7x), where
    # splitting N lets the "parallel" grid axis feed both cores.
    tn = n_pad
    if _tensorcores_per_chip() >= 2 and n_pad >= 256 and n_pad % 256 == 0:
        tn = n_pad // 2

    # K tiling: full K if the (double-buffered) weight tile fits; otherwise a wide
    # reduction tile, with K re-padded so tiles divide evenly (zero pad is inert).
    if 2 * k_pad * tn * 2 <= w_budget:
        tk = k_pad
    else:
        tk = 512
        while tk > 128 and 2 * tk * tn * 2 > w_budget:
            tk -= 128
        k_pad = _round_up(k_pad, tk)
    num_k = k_pad // tk

    f32 = jnp.float32
    w_p = jnp.zeros((k_pad, n_pad), jnp.bfloat16).at[:k, :n].set(
        weight.T.astype(jnp.bfloat16))
    b_p = jnp.zeros((1, n_pad), f32).at[0, :n].set(bias.astype(f32))
    g_p = jnp.zeros((1, n_pad), f32).at[0, :n].set(gamma.astype(f32))
    be_p = jnp.zeros((1, n_pad), f32).at[0, :n].set(beta.astype(f32))

    params = FCBlockParams(w=w_p, b=b_p, gamma=g_p, beta=be_p)
    cfg = FCBlockConfig(in_features=k, out_features=n, k_pad=k_pad, n_pad=n_pad,
                        tk=tk, tn=tn, num_k=num_k, vmem_usable=int(vmem_usable))
    return params, cfg


def _fc_block_kernel(x_ref, w_ref, b_ref, g_ref, beta_ref, o_ref, *,
                     num_k, tk, x_resident, m_actual, mask_rows, eps):
    """Fused: y = x @ W + b ; BatchNorm(batch stats) ; SiLU."""

    def epilogue(y):
        inv_m = jnp.float32(1.0 / m_actual)
        if mask_rows:
            rows = jax.lax.broadcasted_iota(jnp.int32, y.shape, 0)
            row_ok = rows < m_actual
            mean = jnp.sum(jnp.where(row_ok, y, 0.0), axis=0, keepdims=True) * inv_m
            centered = jnp.where(row_ok, y - mean, 0.0)
        else:
            mean = jnp.sum(y, axis=0, keepdims=True) * inv_m
            centered = y - mean
        # Centered variance: no E[y^2]-E[y]^2 cancellation, cannot go negative.
        var = jnp.sum(centered * centered, axis=0, keepdims=True) * inv_m
        scale = g_ref[...] * jax.lax.rsqrt(var + eps)   # gamma / sqrt(var+eps)
        shift = beta_ref[...] - mean * scale
        z = y * scale + shift
        o_ref[...] = (z * jax.nn.sigmoid(z)).astype(o_ref.dtype)   # SiLU

    if num_k == 1:
        # Single-step fast path: no k loop, no zero-init, no pl.when phases.
        y = jnp.dot(x_ref[...], w_ref[...],
                    preferred_element_type=jnp.float32) + b_ref[...]
        epilogue(y)
    else:
        k = pl.program_id(1)

        @pl.when(k == 0)
        def _():
            o_ref[...] = jnp.zeros_like(o_ref)

        if x_resident:
            off = pl.multiple_of(k * tk, tk)
            xb = x_ref[:, pl.ds(off, tk)]
        else:
            xb = x_ref[...]
        # Accumulate directly into the resident f32 output block (no scratch buffer).
        o_ref[...] += jnp.dot(xb, w_ref[...], preferred_element_type=jnp.float32)

        @pl.when(k == num_k - 1)
        def _():
            epilogue(o_ref[...] + b_ref[...])


def fc_block_forward(x, params, cfg, eps=BN_EPS):
    """FC_block forward. x: (M, K) float32, returns (M, N) float32."""
    m, k = x.shape
    assert k == cfg.in_features
    m_pad = _round_up(max(m, 8), 8)

    x_p = jnp.zeros((m_pad, cfg.k_pad), jnp.bfloat16).at[:m, :k].set(
        x.astype(jnp.bfloat16))

    # Keep x resident across the whole grid when it fits (DMAed once); otherwise
    # stream (m_pad, tk) slices per reduction step.
    x_resident = (cfg.num_k == 1) or (m_pad * cfg.k_pad * 2 <= cfg.vmem_usable // 4)

    # Static VMEM estimate for the full-batch-in-VMEM BN-stats design.
    x_bytes = m_pad * cfg.k_pad * 2 if x_resident else 2 * m_pad * cfg.tk * 2
    w_bytes = 2 * cfg.tk * cfg.tn * 2
    o_bytes = 2 * m_pad * cfg.tn * 4
    small_bytes = 2 * 3 * cfg.tn * 4
    epi_bytes = 3 * m_pad * cfg.tn * 4            # headroom for f32 epilogue temps
    est = x_bytes + w_bytes + o_bytes + small_bytes + epi_bytes
    if est > cfg.vmem_usable:
        # TODO(synk): implement the M-tiled two-pass (partial sum / sum-of-squares)
        # variant so BN statistics no longer require the whole batch in one VMEM block.
        raise ValueError(
            f"FC_block kernel VMEM estimate {est} B exceeds usable "
            f"{cfg.vmem_usable} B; batch too large for single-block BN statistics.")

    vmem_limit = min(cfg.vmem_usable, max(2 * est + (4 << 20), 16 << 20))

    if x_resident:
        x_spec = pl.BlockSpec((m_pad, cfg.k_pad), lambda n, kk: (0, 0))
    else:
        x_spec = pl.BlockSpec((m_pad, cfg.tk), lambda n, kk: (0, kk))

    grid = (cfg.n_pad // cfg.tn, cfg.num_k)

    out = pl.pallas_call(
        functools.partial(_fc_block_kernel, num_k=cfg.num_k, tk=cfg.tk,
                          x_resident=x_resident, m_actual=m,
                          mask_rows=(m != m_pad), eps=eps),
        out_shape=jax.ShapeDtypeStruct((m_pad, cfg.n_pad), jnp.float32),
        grid=grid,
        in_specs=[
            x_spec,                                                 # x (resident)
            pl.BlockSpec((cfg.tk, cfg.tn), lambda n, kk: (kk, n)),  # W^T tile
            pl.BlockSpec((1, cfg.tn), lambda n, kk: (0, n)),        # bias
            pl.BlockSpec((1, cfg.tn), lambda n, kk: (0, n)),        # gamma
            pl.BlockSpec((1, cfg.tn), lambda n, kk: (0, n)),        # beta
        ],
        out_specs=pl.BlockSpec((m_pad, cfg.tn), lambda n, kk: (0, n)),
        compiler_params=pltpu.CompilerParams(
            dimension_semantics=("parallel", "arbitrary"),
            vmem_limit_bytes=int(vmem_limit)),
    )(x_p, params.w, params.b, params.gamma, params.beta)

    return out[:m, :cfg.out_features]


def init_fc_block_params(key, in_features, out_features):
    k_w, k_b = jax.random.split(key)
    bound = 1.0 / (in_features ** 0.5)
    weight = jax.random.uniform(k_w, (out_features, in_features), jnp.float32,
                                -bound, bound)
    bias = jax.random.uniform(k_b, (out_features,), jnp.float32, -bound, bound)
    gamma = jnp.ones((out_features,), jnp.float32)
    beta = jnp.zeros((out_features,), jnp.float32)
    return weight, bias, gamma, beta


def _reference(x, weight, bias, gamma, beta, eps=BN_EPS):
    y = x @ weight.T + bias
    mean = jnp.mean(y, axis=0)
    var = jnp.mean(jnp.square(y - mean[None, :]), axis=0)       # biased variance
    yhat = (y - mean[None, :]) / jnp.sqrt(var[None, :] + eps)
    z = yhat * gamma[None, :] + beta[None, :]
    return z * jax.nn.sigmoid(z)


if __name__ == "__main__":
    BATCH, IN_FEATURES, OUT_FEATURES = 16, 256, 512

    key = jax.random.PRNGKey(0)
    k_x, k_p = jax.random.split(key)
    x = jax.random.normal(k_x, (BATCH, IN_FEATURES), jnp.float32)
    weight, bias, gamma, beta = init_fc_block_params(k_p, IN_FEATURES, OUT_FEATURES)

    # One-time parameter prep (pad + bf16 cast), hoisted out of the forward path.
    params, cfg = prepare_fc_block_params(weight, bias, gamma, beta)

    fwd = jax.jit(fc_block_forward, static_argnums=(2,))
    out = fwd(x, params, cfg)
    jax.block_until_ready(out)

    assert out.shape == (BATCH, OUT_FEATURES)
    ref = _reference(x, weight, bias, gamma, beta)
    assert bool(jnp.all(jnp.isfinite(out)))
    # Loose tolerance: kernel uses bf16 matmul operands with f32 accumulation, and BN
    # normalization amplifies matmul rounding relative to the f32 reference.
    assert bool(jnp.allclose(out, ref, rtol=5e-2, atol=5e-2)), (
        float(jnp.max(jnp.abs(out - ref))))
    print("KERNEL_OK")
</pallas_src>

<mosaic_0001>
module attributes {stable_mosaic.version = 11 : i64} {
  func.func @_fc_block_kernel(%arg0: i32, %arg1: i32, %arg2: memref<16x256xbf16, #tpu.memory_space<vmem>>, %arg3: memref<256x512xbf16, #tpu.memory_space<vmem>>, %arg4: memref<1x512xf32, #tpu.memory_space<vmem>>, %arg5: memref<1x512xf32, #tpu.memory_space<vmem>>, %arg6: memref<1x512xf32, #tpu.memory_space<vmem>>, %arg7: memref<16x512xf32, #tpu.memory_space<vmem>>) attributes {dimension_semantics = [#tpu.dimension_semantics<parallel>, #tpu.dimension_semantics<arbitrary>], iteration_bounds = array<i64: 1, 1>, scalar_prefetch = 0 : i64, scratch_operands = 0 : i64, tpu.core_type = #tpu.core_type<tc>, window_params = [{pipeline_mode = #tpu.pipeline_mode<synchronous>, transform_indices = @transform_0, window_bounds = array<i64: 16, 256>}, {transform_indices = @transform_1, window_bounds = array<i64: 256, 512>}, {transform_indices = @transform_2, window_bounds = array<i64: 1, 512>}, {transform_indices = @transform_3, window_bounds = array<i64: 1, 512>}, {transform_indices = @transform_4, window_bounds = array<i64: 1, 512>}, {transform_indices = @transform_5, window_bounds = array<i64: 16, 512>}]} {
    %c0 = arith.constant 0 : index
    %c0_0 = arith.constant 0 : index
    %0 = vector.load %arg2[%c0, %c0_0] : memref<16x256xbf16, #tpu.memory_space<vmem>>, vector<16x256xbf16>
    %c0_1 = arith.constant 0 : index
    %c0_2 = arith.constant 0 : index
    %1 = vector.load %arg3[%c0_1, %c0_2] : memref<256x512xbf16, #tpu.memory_space<vmem>>, vector<256x512xbf16>
    %cst = arith.constant dense<0.000000e+00> : vector<16x512xf32>
    %2 = tpu.matmul %0, %1, %cst {dimension_numbers = #tpu.dot_dimension_numbers<[1], [0], [0], [1], [0, 0, 1, 1], [], []>} : vector<16x256xbf16>, vector<256x512xbf16>, vector<16x512xf32> -> vector<16x512xf32>
    %c0_3 = arith.constant 0 : index
    %c0_4 = arith.constant 0 : index
    %3 = vector.load %arg4[%c0_3, %c0_4] : memref<1x512xf32, #tpu.memory_space<vmem>>, vector<1x512xf32>
    %4 = vector.broadcast %3 : vector<1x512xf32> to vector<16x512xf32>
    %5 = arith.addf %2, %4 : vector<16x512xf32>
    %cst_5 = arith.constant dense<0.000000e+00> : vector<512xf32>
    %6 = vector.multi_reduction <add>, %5, %cst_5 [0] : vector<16x512xf32> to vector<512xf32>
    %7 = vector.shape_cast %6 : vector<512xf32> to vector<1x512xf32>
    %cst_6 = arith.constant 6.250000e-02 : f32
    %8 = vector.broadcast %cst_6 : f32 to vector<1x512xf32>
    %9 = arith.mulf %7, %8 : vector<1x512xf32>
    %10 = vector.broadcast %9 : vector<1x512xf32> to vector<16x512xf32>
    %11 = arith.subf %5, %10 : vector<16x512xf32>
    %12 = arith.mulf %11, %11 : vector<16x512xf32>
    %cst_7 = arith.constant dense<0.000000e+00> : vector<512xf32>
    %13 = vector.multi_reduction <add>, %12, %cst_7 [0] : vector<16x512xf32> to vector<512xf32>
    %14 = vector.shape_cast %13 : vector<512xf32> to vector<1x512xf32>
    %cst_8 = arith.constant 6.250000e-02 : f32
    %15 = vector.broadcast %cst_8 : f32 to vector<1x512xf32>
    %16 = arith.mulf %14, %15 : vector<1x512xf32>
    %c0_9 = arith.constant 0 : index
    %c0_10 = arith.constant 0 : index
    %17 = vector.load %arg5[%c0_9, %c0_10] : memref<1x512xf32, #tpu.memory_space<vmem>>, vector<1x512xf32>
    %cst_11 = arith.constant 9.99999974E-6 : f32
    %18 = vector.broadcast %cst_11 : f32 to vector<1x512xf32>
    %19 = arith.addf %16, %18 : vector<1x512xf32>
    %20 = math.rsqrt %19 : vector<1x512xf32>
    %21 = arith.mulf %17, %20 : vector<1x512xf32>
    %c0_12 = arith.constant 0 : index
    %c0_13 = arith.constant 0 : index
    %22 = vector.load %arg6[%c0_12, %c0_13] : memref<1x512xf32, #tpu.memory_space<vmem>>, vector<1x512xf32>
    %23 = arith.mulf %9, %21 : vector<1x512xf32>
    %24 = arith.subf %22, %23 : vector<1x512xf32>
    %25 = vector.broadcast %21 : vector<1x512xf32> to vector<16x512xf32>
    %26 = arith.mulf %5, %25 : vector<16x512xf32>
    %27 = vector.broadcast %24 : vector<1x512xf32> to vector<16x512xf32>
    %28 = arith.addf %26, %27 : vector<16x512xf32>
    %29 = arith.negf %28 : vector<16x512xf32>
    %30 = math.exp %29 : vector<16x512xf32>
    %cst_14 = arith.constant 1.000000e+00 : f32
    %31 = vector.broadcast %cst_14 : f32 to vector<16x512xf32>
    %32 = arith.addf %31, %30 : vector<16x512xf32>
    %33 = arith.divf %31, %32 : vector<16x512xf32>
    %34 = arith.mulf %28, %33 : vector<16x512xf32>
    %c0_15 = arith.constant 0 : index
    %c0_16 = arith.constant 0 : index
    %35 = vector.load %arg7[%c0_15, %c0_16] : memref<16x512xf32, #tpu.memory_space<vmem>>, vector<16x512xf32>
    tpu.vector_store %arg7[%c0_15, %c0_16], %34 {strides = array<i32>} : memref<16x512xf32, #tpu.memory_space<vmem>>, vector<16x512xf32>,
    return
  }
  func.func @transform_0(%arg0: i32, %arg1: i32) -> (i32, i32) {
    %c0_i32 = arith.constant 0 : i32
    %c0_i32_0 = arith.constant 0 : i32
    %c0_i32_1 = arith.constant 0 : i32
    return %c0_i32, %c0_i32_0 : i32, i32
  }
  func.func @transform_1(%arg0: i32, %arg1: i32) -> (i32, i32) {
    %c0_i32 = arith.constant 0 : i32
    return %arg1, %arg0 : i32, i32
  }
  func.func @transform_2(%arg0: i32, %arg1: i32) -> (i32, i32) {
    %c0_i32 = arith.constant 0 : i32
    %c0_i32_0 = arith.constant 0 : i32
    return %c0_i32, %arg0 : i32, i32
  }
  func.func @transform_3(%arg0: i32, %arg1: i32) -> (i32, i32) {
    %c0_i32 = arith.constant 0 : i32
    %c0_i32_0 = arith.constant 0 : i32
    return %c0_i32, %arg0 : i32, i32
  }
  func.func @transform_4(%arg0: i32, %arg1: i32) -> (i32, i32) {
    %c0_i32 = arith.constant 0 : i32
    %c0_i32_0 = arith.constant 0 : i32
    return %c0_i32, %arg0 : i32, i32
  }
  func.func @transform_5(%arg0: i32, %arg1: i32) -> (i32, i32) {
    %c0_i32 = arith.constant 0 : i32
    %c0_i32_0 = arith.constant 0 : i32
    return %c0_i32, %arg0 : i32, i32
  }
}

</mosaic_0001>

<llo_original>
// kernel: fc_block_forward.1
$region0: #{fc_block_forward.1}
  #allocation0 [shape = 'u32[]', space=smem, size = 0x4, offset = 0x4, fixed_abs, tag = 'smem constant byte address 0x4 - core index']
  #allocation1 [shape = 'u32[72,128]{1,0:T(1,128)}', space=vmem, size = 0x9000, scoped, tag = 'internal scratch']
  %s0 = inlined_call_operand.vmem [shape: bf16[16,256], index: 0, kind: input, shape index: {}]
  %s1 = inlined_call_operand.hbm [shape: bf16[256,512], index: 1, kind: input, shape index: {}]
  %s2 = inlined_call_operand.vmem [shape: f32[1,512], index: 2, kind: input, shape index: {}]
  %s3 = inlined_call_operand.vmem [shape: f32[1,512], index: 3, kind: input, shape index: {}]
  %s4 = inlined_call_operand.vmem [shape: f32[1,512], index: 4, kind: input, shape index: {}]
  %s5 = inlined_call_operand.hbm [shape: f32[16,512], index: 5, kind: output, shape index: {}]
  %s6 = sld [smem:[#allocation0]]
  $region34: #{fc_block_forward.1} parent=0
    _
  %s8 = ssub.s32 1, %s6
  %s9 = scalar_select 0, %s8, %s6
  $region1: #{fc_block_forward.1} parent=0
    #allocation2 [shape = 'u8[262144]{0}', space=vmem, size = 0x40000, scoped, tag = 'input window, operand 1, single buffered']
    #allocation3 [shape = 's32[1]{0}', space=sflag, size = 0x4, scoped, tag = 'scoped memory for fc_block_forward.1']
    #allocation4 [shape = 's32[1]{0}', space=sflag, size = 0x4, scoped, tag = 'scoped memory for fc_block_forward.1']
    #allocation5 [shape = 'u8[32768]{0}', space=vmem, size = 0x8000, scoped, tag = 'output window, operand 0, single buffered']
    %10 = vsyncpa [#allocation3], 0
    %11 = vsyncpa [#allocation4], 0
    // Predicated region
    $region2: #{fc_block_forward.1} parent=1 // pred_check
      _
    $region3: #{fc_block_forward.1} parent=1 // pred_check_branch
      %13 = sbr.rel (0) target = $region5
    $region4: #{fc_block_forward.1} parent=1 // pred_region
      _
    $region5: #{fc_block_forward.1} parent=1 // pred_fallthru
      _
    // Predicated region
    $region6: #{fc_block_forward.1} parent=1 // pred_check
      _
    $region7: #{fc_block_forward.1} parent=1 // pred_check_branch
      %15 = sbr.rel (0) target = $region9
    $region8: #{fc_block_forward.1} parent=1 // pred_region
      %17 = vsyncadd [#allocation3], 0
      %s18 = sshll.u32 %s1, 4
      %s19 = int_to_ptr.hbm [resolvable:$true] %s18
      %s20 = sshll.u32 [#allocation2], 4
      %s21 = int_to_ptr.vmem [resolvable:$true] %s20
      %26 = dma.hbm_to_vmem [thread:$0]  %s19, 8192, %s21, [#allocation3], 256, 256, 16
    $region9: #{fc_block_forward.1} parent=1 // pred_fallthru
      _
    // Predicated region
    $region10: #{fc_block_forward.1} parent=1 // pred_check
      _
    $region11: #{fc_block_forward.1} parent=1 // pred_check_branch
      %28 = sbr.rel (0) target = $region13
    $region12: #{fc_block_forward.1} parent=1 // pred_region
      _
    $region13: #{fc_block_forward.1} parent=1 // pred_fallthru
      _
    // Predicated region
    $region14: #{fc_block_forward.1} parent=1 // pred_check
      _
    $region15: #{fc_block_forward.1} parent=1 // pred_check_branch
      %30 = sbr.rel (0) target = $region17
    $region16: #{fc_block_forward.1} parent=1 // pred_region
      _
    $region17: #{fc_block_forward.1} parent=1 // pred_fallthru
      _
    // Predicated region
    $region18: #{fc_block_forward.1} parent=1 // pred_check
      _
    $region19: #{fc_block_forward.1} parent=1 // pred_check_branch
      %32 = sbr.rel (0) target = $region21
    $region20: #{fc_block_forward.1} parent=1 // pred_region
      _
    $region21: #{fc_block_forward.1} parent=1 // pred_fallthru
      _
    // Predicated region
    $region22: #{fc_block_forward.1} parent=1 // pred_check
      _
    $region23: #{fc_block_forward.1} parent=1 // pred_check_branch
      %34 = sbr.rel (0) target = $region25
    $region24: #{fc_block_forward.1} parent=1 // pred_region
      %36 = dma.done [#allocation3], 8192
    $region25: #{fc_block_forward.1} parent=1 // pred_fallthru
      _
    %v37 = vld [vmem:[%s0] sm:$0xff]
    %v38 = vld [vmem:[%s0 + $0x8] sm:$0xff]
    %v39 = vld [vmem:[#allocation2] sm:$0xff]
    %v40 = vld [vmem:[#allocation2 + $0x8] sm:$0xff]
    %v41 = vld [vmem:[#allocation2 + $0x10] sm:$0xff]
    %v42 = vld [vmem:[#allocation2 + $0x18] sm:$0xff]
    %v43 = vld [vmem:[#allocation2 + $0x20] sm:$0xff]
    %v44 = vld [vmem:[#allocation2 + $0x28] sm:$0xff]
    %v45 = vld [vmem:[#allocation2 + $0x30] sm:$0xff]
    %v46 = vld [vmem:[#allocation2 + $0x38] sm:$0xff]
    %v47 = vld [vmem:[#allocation2 + $0x40] sm:$0xff]
    %v48 = vld [vmem:[#allocation2 + $0x48] sm:$0xff]
    %v49 = vld [vmem:[#allocation2 + $0x50] sm:$0xff]
    %v50 = vld [vmem:[#allocation2 + $0x58] sm:$0xff]
    %v51 = vld [vmem:[#allocation2 + $0x60] sm:$0xff]
    %v52 = vld [vmem:[#allocation2 + $0x68] sm:$0xff]
    %v53 = vld [vmem:[#allocation2 + $0x70] sm:$0xff]
    %v54 = vld [vmem:[#allocation2 + $0x78] sm:$0xff]
    %v55 = vld [vmem:[#allocation2 + $0x80] sm:$0xff]
    %v56 = vld [vmem:[#allocation2 + $0x88] sm:$0xff]
    %v57 = vld [vmem:[#allocation2 + $0x90] sm:$0xff]
    %v58 = vld [vmem:[#allocation2 + $0x98] sm:$0xff]
    %v59 = vld [vmem:[#allocation2 + $0xa0] sm:$0xff]
    %v60 = vld [vmem:[#allocation2 + $0xa8] sm:$0xff]
    %v61 = vld [vmem:[#allocation2 + $0xb0] sm:$0xff]
    %v62 = vld [vmem:[#allocation2 + $0xb8] sm:$0xff]
    %v63 = vld [vmem:[#allocation2 + $0xc0] sm:$0xff]
    %v64 = vld [vmem:[#allocation2 + $0xc8] sm:$0xff]
    %v65 = vld [vmem:[#allocation2 + $0xd0] sm:$0xff]
    %v66 = vld [vmem:[#allocation2 + $0xd8] sm:$0xff]
    %v67 = vld [vmem:[#allocation2 + $0xe0] sm:$0xff]
    %v68 = vld [vmem:[#allocation2 + $0xe8] sm:$0xff]
    %v69 = vld [vmem:[#allocation2 + $0xf0] sm:$0xff]
    %v70 = vld [vmem:[#allocation2 + $0xf8] sm:$0xff]
    %v71 = vld [vmem:[#allocation2 + $0x100] sm:$0xff]
    %v72 = vld [vmem:[#allocation2 + $0x108] sm:$0xff]
    %v73 = vld [vmem:[#allocation2 + $0x110] sm:$0xff]
    %v74 = vld [vmem:[#allocation2 + $0x118] sm:$0xff]
    %v75 = vld [vmem:[#allocation2 + $0x120] sm:$0xff]
    %v76 = vld [vmem:[#allocation2 + $0x128] sm:$0xff]
    %v77 = vld [vmem:[#allocation2 + $0x130] sm:$0xff]
    %v78 = vld [vmem:[#allocation2 + $0x138] sm:$0xff]
    %v79 = vld [vmem:[#allocation2 + $0x140] sm:$0xff]
    %v80 = vld [vmem:[#allocation2 + $0x148] sm:$0xff]
    %v81 = vld [vmem:[#allocation2 + $0x150] sm:$0xff]
    %v82 = vld [vmem:[#allocation2 + $0x158] sm:$0xff]
    %v83 = vld [vmem:[#allocation2 + $0x160] sm:$0xff]
    %v84 = vld [vmem:[#allocation2 + $0x168] sm:$0xff]
    %v85 = vld [vmem:[#allocation2 + $0x170] sm:$0xff]
    %v86 = vld [vmem:[#allocation2 + $0x178] sm:$0xff]
    %v87 = vld [vmem:[#allocation2 + $0x180] sm:$0xff]
    %v88 = vld [vmem:[#allocation2 + $0x188] sm:$0xff]
    %v89 = vld [vmem:[#allocation2 + $0x190] sm:$0xff]
    %v90 = vld [vmem:[#allocation2 + $0x198] sm:$0xff]
    %v91 = vld [vmem:[#allocation2 + $0x1a0] sm:$0xff]
    %v92 = vld [vmem:[#allocation2 + $0x1a8] sm:$0xff]
    %v93 = vld [vmem:[#allocation2 + $0x1b0] sm:$0xff]
    %v94 = vld [vmem:[#allocation2 + $0x1b8] sm:$0xff]
    %v95 = vld [vmem:[#allocation2 + $0x1c0] sm:$0xff]
    %v96 = vld [vmem:[#allocation2 + $0x1c8] sm:$0xff]
    %v97 = vld [vmem:[#allocation2 + $0x1d0] sm:$0xff]
    %v98 = vld [vmem:[#allocation2 + $0x1d8] sm:$0xff]
    %v99 = vld [vmem:[#allocation2 + $0x1e0] sm:$0xff]
    %v100 = vld [vmem:[#allocation2 + $0x1e8] sm:$0xff]
    %v101 = vld [vmem:[#allocation2 + $0x1f0] sm:$0xff]
    %v102 = vld [vmem:[#allocation2 + $0x1f8] sm:$0xff]
    %v103 = vld [vmem:[%s2] sm:$0xf]
    %v105 = vperm.slane %v103, 0
    %v106 = vperm.slane %v103, 1
    %v107 = vperm.slane %v103, 2
    %v108 = vperm.slane %v103, 3
    %v115 = vunpack.c.l.b16 %v37
    %v116 = vunpack.c.h.b16 %v37
    %v117 = vunpack.c.l.b16 %v38
    %v118 = vunpack.c.h.b16 %v38
    %v119 = vpack.c.b16 %v117, %v115
    %v120 = vpack.c.b16 %v118, %v116
    %v187 = vunpack.c.l.b16 %v39
    %v188 = vunpack.c.h.b16 %v39
    %v189 = vunpack.c.l.b16 %v40
    %v190 = vunpack.c.h.b16 %v40
    %v191 = vunpack.c.l.b16 %v41
    %v192 = vunpack.c.h.b16 %v41
    %v193 = vunpack.c.l.b16 %v42
    %v194 = vunpack.c.h.b16 %v42
    %v195 = vunpack.c.l.b16 %v43
    %v196 = vunpack.c.h.b16 %v43
    %v197 = vunpack.c.l.b16 %v44
    %v198 = vunpack.c.h.b16 %v44
    %v199 = vunpack.c.l.b16 %v45
    %v200 = vunpack.c.h.b16 %v45
    %v201 = vunpack.c.l.b16 %v46
    %v202 = vunpack.c.h.b16 %v46
    %v203 = vunpack.c.l.b16 %v47
    %v204 = vunpack.c.h.b16 %v47
    %v205 = vunpack.c.l.b16 %v48
    %v206 = vunpack.c.h.b16 %v48
    %v207 = vunpack.c.l.b16 %v49
    %v208 = vunpack.c.h.b16 %v49
    %v209 = vunpack.c.l.b16 %v50
    %v210 = vunpack.c.h.b16 %v50
    %v211 = vunpack.c.l.b16 %v51
    %v212 = vunpack.c.h.b16 %v51
    %v213 = vunpack.c.l.b16 %v52
    %v214 = vunpack.c.h.b16 %v52
    %v215 = vunpack.c.l.b16 %v53
    %v216 = vunpack.c.h.b16 %v53
    %v217 = vunpack.c.l.b16 %v54
    %v218 = vunpack.c.h.b16 %v54
    %v219 = vunpack.c.l.b16 %v55
    %v220 = vunpack.c.h.b16 %v55
    %v221 = vunpack.c.l.b16 %v56
    %v222 = vunpack.c.h.b16 %v56
    %v223 = vunpack.c.l.b16 %v57
    %v224 = vunpack.c.h.b16 %v57
    %v225 = vunpack.c.l.b16 %v58
    %v226 = vunpack.c.h.b16 %v58
    %v227 = vunpack.c.l.b16 %v59
    %v228 = vunpack.c.h.b16 %v59
    %v229 = vunpack.c.l.b16 %v60
    %v230 = vunpack.c.h.b16 %v60
    %v231 = vunpack.c.l.b16 %v61
    %v232 = vunpack.c.h.b16 %v61
    %v233 = vunpack.c.l.b16 %v62
    %v234 = vunpack.c.h.b16 %v62
    %v235 = vunpack.c.l.b16 %v63
    %v236 = vunpack.c.h.b16 %v63
    %v237 = vunpack.c.l.b16 %v64
    %v238 = vunpack.c.h.b16 %v64
    %v239 = vunpack.c.l.b16 %v65
    %v240 = vunpack.c.h.b16 %v65
    %v241 = vunpack.c.l.b16 %v66
    %v242 = vunpack.c.h.b16 %v66
    %v243 = vunpack.c.l.b16 %v67
    %v244 = vunpack.c.h.b16 %v67
    %v245 = vunpack.c.l.b16 %v68
    %v246 = vunpack.c.h.b16 %v68
    %v247 = vunpack.c.l.b16 %v69
    %v248 = vunpack.c.h.b16 %v69
    %v249 = vunpack.c.l.b16 %v70
    %v250 = vunpack.c.h.b16 %v70
    %v251 = vunpack.c.l.b16 %v71
    %v252 = vunpack.c.h.b16 %v71
    %v253 = vunpack.c.l.b16 %v72
    %v254 = vunpack.c.h.b16 %v72
    %v255 = vunpack.c.l.b16 %v73
    %v256 = vunpack.c.h.b16 %v73
    %v257 = vunpack.c.l.b16 %v74
    %v258 = vunpack.c.h.b16 %v74
    %v259 = vunpack.c.l.b16 %v75
    %v260 = vunpack.c.h.b16 %v75
    %v261 = vunpack.c.l.b16 %v76
    %v262 = vunpack.c.h.b16 %v76
    %v263 = vunpack.c.l.b16 %v77
    %v264 = vunpack.c.h.b16 %v77
    %v265 = vunpack.c.l.b16 %v78
    %v266 = vunpack.c.h.b16 %v78
    %v267 = vunpack.c.l.b16 %v79
    %v268 = vunpack.c.h.b16 %v79
    %v269 = vunpack.c.l.b16 %v80
    %v270 = vunpack.c.h.b16 %v80
    %v271 = vunpack.c.l.b16 %v81
    %v272 = vunpack.c.h.b16 %v81
    %v273 = vunpack.c.l.b16 %v82
    %v274 = vunpack.c.h.b16 %v82
    %v275 = vunpack.c.l.b16 %v83
    %v276 = vunpack.c.h.b16 %v83
    %v277 = vunpack.c.l.b16 %v84
    %v278 = vunpack.c.h.b16 %v84
    %v279 = vunpack.c.l.b16 %v85
    %v280 = vunpack.c.h.b16 %v85
    %v281 = vunpack.c.l.b16 %v86
    %v282 = vunpack.c.h.b16 %v86
    %v283 = vunpack.c.l.b16 %v87
    %v284 = vunpack.c.h.b16 %v87
    %v285 = vunpack.c.l.b16 %v88
    %v286 = vunpack.c.h.b16 %v88
    %v287 = vunpack.c.l.b16 %v89
    %v288 = vunpack.c.h.b16 %v89
    %v289 = vunpack.c.l.b16 %v90
    %v290 = vunpack.c.h.b16 %v90
    %v291 = vunpack.c.l.b16 %v91
    %v292 = vunpack.c.h.b16 %v91
    %v293 = vunpack.c.l.b16 %v92
    %v294 = vunpack.c.h.b16 %v92
    %v295 = vunpack.c.l.b16 %v93
    %v296 = vunpack.c.h.b16 %v93
    %v297 = vunpack.c.l.b16 %v94
    %v298 = vunpack.c.h.b16 %v94
    %v299 = vunpack.c.l.b16 %v95
    %v300 = vunpack.c.h.b16 %v95
    %v301 = vunpack.c.l.b16 %v96
    %v302 = vunpack.c.h.b16 %v96
    %v303 = vunpack.c.l.b16 %v97
    %v304 = vunpack.c.h.b16 %v97
    %v305 = vunpack.c.l.b16 %v98
    %v306 = vunpack.c.h.b16 %v98
    %v307 = vunpack.c.l.b16 %v99
    %v308 = vunpack.c.h.b16 %v99
    %v309 = vunpack.c.l.b16 %v100
    %v310 = vunpack.c.h.b16 %v100
    %v311 = vunpack.c.l.b16 %v101
    %v312 = vunpack.c.h.b16 %v101
    %v313 = vunpack.c.l.b16 %v102
    %v314 = vunpack.c.h.b16 %v102
    %v315 = vpack.c.b16 %v191, %v187
    %v316 = vpack.c.b16 %v192, %v188
    %v317 = vpack.c.b16 %v193, %v189
    %v318 = vpack.c.b16 %v194, %v190
    %v319 = vpack.c.b16 %v199, %v195
    %v320 = vpack.c.b16 %v200, %v196
    %v321 = vpack.c.b16 %v201, %v197
    %v322 = vpack.c.b16 %v202, %v198
    %v323 = vpack.c.b16 %v207, %v203
    %v324 = vpack.c.b16 %v208, %v204
    %v325 = vpack.c.b16 %v209, %v205
    %v326 = vpack.c.b16 %v210, %v206
    %v327 = vpack.c.b16 %v215, %v211
    %v328 = vpack.c.b16 %v216, %v212
    %v329 = vpack.c.b16 %v217, %v213
    %v330 = vpack.c.b16 %v218, %v214
    %v331 = vpack.c.b16 %v223, %v219
    %v332 = vpack.c.b16 %v224, %v220
    %v333 = vpack.c.b16 %v225, %v221
    %v334 = vpack.c.b16 %v226, %v222
    %v335 = vpack.c.b16 %v231, %v227
    %v336 = vpack.c.b16 %v232, %v228
    %v337 = vpack.c.b16 %v233, %v229
    %v338 = vpack.c.b16 %v234, %v230
    %v339 = vpack.c.b16 %v239, %v235
    %v340 = vpack.c.b16 %v240, %v236
    %v341 = vpack.c.b16 %v241, %v237
    %v342 = vpack.c.b16 %v242, %v238
    %v343 = vpack.c.b16 %v247, %v243
    %v344 = vpack.c.b16 %v248, %v244
    %v345 = vpack.c.b16 %v249, %v245
    %v346 = vpack.c.b16 %v250, %v246
    %v347 = vpack.c.b16 %v255, %v251
    %v348 = vpack.c.b16 %v256, %v252
    %v349 = vpack.c.b16 %v257, %v253
    %v350 = vpack.c.b16 %v258, %v254
    %v351 = vpack.c.b16 %v263, %v259
    %v352 = vpack.c.b16 %v264, %v260
    %v353 = vpack.c.b16 %v265, %v261
    %v354 = vpack.c.b16 %v266, %v262
    %v355 = vpack.c.b16 %v271, %v267
    %v356 = vpack.c.b16 %v272, %v268
    %v357 = vpack.c.b16 %v273, %v269
    %v358 = vpack.c.b16 %v274, %v270
    %v359 = vpack.c.b16 %v279, %v275
    %v360 = vpack.c.b16 %v280, %v276
    %v361 = vpack.c.b16 %v281, %v277
    %v362 = vpack.c.b16 %v282, %v278
    %v363 = vpack.c.b16 %v287, %v283
    %v364 = vpack.c.b16 %v288, %v284
    %v365 = vpack.c.b16 %v289, %v285
    %v366 = vpack.c.b16 %v290, %v286
    %v367 = vpack.c.b16 %v295, %v291
    %v368 = vpack.c.b16 %v296, %v292
    %v369 = vpack.c.b16 %v297, %v293
    %v370 = vpack.c.b16 %v298, %v294
    %v371 = vpack.c.b16 %v303, %v299
    %v372 = vpack.c.b16 %v304, %v300
    %v373 = vpack.c.b16 %v305, %v301
    %v374 = vpack.c.b16 %v306, %v302
    %v375 = vpack.c.b16 %v311, %v307
    %v376 = vpack.c.b16 %v312, %v308
    %v377 = vpack.c.b16 %v313, %v309
    %v378 = vpack.c.b16 %v314, %v310
    %443 = vmatpush.bf16.msra.mxu0 %v343
    %444 = vmatpush.bf16.msra.mxu0 %v339
    %445 = vmatpush.bf16.msra.mxu0 %v335
    %446 = vmatpush.bf16.msra.mxu0 %v331
    %447 = vmatpush.bf16.msra.mxu0 %v327
    %448 = vmatpush.bf16.msra.mxu0 %v323
    %449 = vmatpush.bf16.msra.mxu0 %v319
    %450 = vmatpush.bf16.msra.mxu0 %v315
    %451 = vmatmul.bf16.gmra.mxu0 %v119
    %v452 = vpop.f32.mrf.mxu0
    %v453 = vadd.f32 %v105, %v452
    %v454 = vpop.f32.mrf.mxu0
    %v455 = vadd.f32 %v105, %v454
    %456 = vdwg.mxu0
    %457 = vmatpush.bf16.msra.mxu0 %v375
    %458 = vmatpush.bf16.msra.mxu0 %v371
    %459 = vmatpush.bf16.msra.mxu0 %v367
    %460 = vmatpush.bf16.msra.mxu0 %v363
    %461 = vmatpush.bf16.msra.mxu0 %v359
    %462 = vmatpush.bf16.msra.mxu0 %v355
    %463 = vmatpush.bf16.msra.mxu0 %v351
    %464 = vmatpush.bf16.msra.mxu0 %v347
    %465 = vmatmul.bf16.gmra.mxu0 %v120
    %v466 = vpop.f32.mrf.mxu0
    %v467 = vadd.f32 %v453, %v466
    %v468 = vpop.f32.mrf.mxu0
    %v469 = vadd.f32 %v455, %v468
    %470 = vdwg.mxu0
    %471 = vmatpush.bf16.msra.mxu0 %v344
    %472 = vmatpush.bf16.msra.mxu0 %v340
    %473 = vmatpush.bf16.msra.mxu0 %v336
    %474 = vmatpush.bf16.msra.mxu0 %v332
    %475 = vmatpush.bf16.msra.mxu0 %v328
    %476 = vmatpush.bf16.msra.mxu0 %v324
    %477 = vmatpush.bf16.msra.mxu0 %v320
    %478 = vmatpush.bf16.msra.mxu0 %v316
    %479 = vmatmul.bf16.gmra.mxu0 %v119
    %v480 = vpop.f32.mrf.mxu0
    %v481 = vadd.f32 %v106, %v480
    %v482 = vpop.f32.mrf.mxu0
    %v483 = vadd.f32 %v106, %v482
    %484 = vdwg.mxu0
    %485 = vmatpush.bf16.msra.mxu0 %v376
    %486 = vmatpush.bf16.msra.mxu0 %v372
    %487 = vmatpush.bf16.msra.mxu0 %v368
    %488 = vmatpush.bf16.msra.mxu0 %v364
    %489 = vmatpush.bf16.msra.mxu0 %v360
    %490 = vmatpush.bf16.msra.mxu0 %v356
    %491 = vmatpush.bf16.msra.mxu0 %v352
    %492 = vmatpush.bf16.msra.mxu0 %v348
    %493 = vmatmul.bf16.gmra.mxu0 %v120
    %v494 = vpop.f32.mrf.mxu0
    %v495 = vadd.f32 %v481, %v494
    %v496 = vpop.f32.mrf.mxu0
    %v497 = vadd.f32 %v483, %v496
    %498 = vdwg.mxu0
    %499 = vmatpush.bf16.msra.mxu0 %v345
    %500 = vmatpush.bf16.msra.mxu0 %v341
    %501 = vmatpush.bf16.msra.mxu0 %v337
    %502 = vmatpush.bf16.msra.mxu0 %v333
    %503 = vmatpush.bf16.msra.mxu0 %v329
    %504 = vmatpush.bf16.msra.mxu0 %v325
    %505 = vmatpush.bf16.msra.mxu0 %v321
    %506 = vmatpush.bf16.msra.mxu0 %v317
    %507 = vmatmul.bf16.gmra.mxu0 %v119
    %v508 = vpop.f32.mrf.mxu0
    %v509 = vadd.f32 %v107, %v508
    %v510 = vpop.f32.mrf.mxu0
    %v511 = vadd.f32 %v107, %v510
    %512 = vdwg.mxu0
    %513 = vmatpush.bf16.msra.mxu0 %v377
    %514 = vmatpush.bf16.msra.mxu0 %v373
    %515 = vmatpush.bf16.msra.mxu0 %v369
    %516 = vmatpush.bf16.msra.mxu0 %v365
    %517 = vmatpush.bf16.msra.mxu0 %v361
    %518 = vmatpush.bf16.msra.mxu0 %v357
    %519 = vmatpush.bf16.msra.mxu0 %v353
    %520 = vmatpush.bf16.msra.mxu0 %v349
    %521 = vmatmul.bf16.gmra.mxu0 %v120
    %v522 = vpop.f32.mrf.mxu0
    %v523 = vadd.f32 %v509, %v522
    %v524 = vpop.f32.mrf.mxu0
    %v525 = vadd.f32 %v511, %v524
    %526 = vdwg.mxu0
    %527 = vmatpush.bf16.msra.mxu0 %v346
    %528 = vmatpush.bf16.msra.mxu0 %v342
    %529 = vmatpush.bf16.msra.mxu0 %v338
    %530 = vmatpush.bf16.msra.mxu0 %v334
    %531 = vmatpush.bf16.msra.mxu0 %v330
    %532 = vmatpush.bf16.msra.mxu0 %v326
    %533 = vmatpush.bf16.msra.mxu0 %v322
    %534 = vmatpush.bf16.msra.mxu0 %v318
    %535 = vmatmul.bf16.gmra.mxu0 %v119
    %v536 = vpop.f32.mrf.mxu0
    %v537 = vadd.f32 %v108, %v536
    %v538 = vpop.f32.mrf.mxu0
    %v539 = vadd.f32 %v108, %v538
    %540 = vdwg.mxu0
    %541 = vmatpush.bf16.msra.mxu0 %v378
    %542 = vmatpush.bf16.msra.mxu0 %v374
    %543 = vmatpush.bf16.msra.mxu0 %v370
    %544 = vmatpush.bf16.msra.mxu0 %v366
    %545 = vmatpush.bf16.msra.mxu0 %v362
    %546 = vmatpush.bf16.msra.mxu0 %v358
    %547 = vmatpush.bf16.msra.mxu0 %v354
    %548 = vmatpush.bf16.msra.mxu0 %v350
    %549 = vmatmul.bf16.gmra.mxu0 %v120
    %v550 = vpop.f32.mrf.mxu0
    %v551 = vadd.f32 %v537, %v550
    %v552 = vpop.f32.mrf.mxu0
    %v553 = vadd.f32 %v539, %v552
    %554 = vdwg.mxu0
    %v555 = vadd.f32 %v467, %v469
    %v556 = vrot.slane %v555, 4
    %v557 = vadd.f32 %v555, %v556
    %v558 = vrot.slane %v557, 2
    %v559 = vadd.f32 %v557, %v558
    %v560 = vrot.slane %v559, 1
    %v561 = vadd.f32 %v559, %v560
    %v562 = vadd.f32 %v495, %v497
    %v563 = vrot.slane %v562, 4
    %v564 = vadd.f32 %v562, %v563
    %v565 = vrot.slane %v564, 2
    %v566 = vadd.f32 %v564, %v565
    %v567 = vrot.slane %v566, 1
    %v568 = vadd.f32 %v566, %v567
    %v569 = vadd.f32 %v523, %v525
    %v570 = vrot.slane %v569, 4
    %v571 = vadd.f32 %v569, %v570
    %v572 = vrot.slane %v571, 2
    %v573 = vadd.f32 %v571, %v572
    %v574 = vrot.slane %v573, 1
    %v575 = vadd.f32 %v573, %v574
    %v576 = vadd.f32 %v551, %v553
    %v577 = vrot.slane %v576, 4
    %v578 = vadd.f32 %v576, %v577
    %v579 = vrot.slane %v578, 2
    %v580 = vadd.f32 %v578, %v579
    %v581 = vrot.slane %v580, 1
    %v582 = vadd.f32 %v580, %v581
    %v583 = vmul.f32 %v561, 0.0625
    %v584 = vmul.f32 %v568, 0.0625
    %v585 = vmul.f32 %v575, 0.0625
    %v586 = vmul.f32 %v582, 0.0625
    %v587 = vsub.f32 %v467, %v583
    %v588 = vsub.f32 %v495, %v584
    %v589 = vsub.f32 %v523, %v585
    %v590 = vsub.f32 %v551, %v586
    %v591 = vsub.f32 %v469, %v583
    %v592 = vsub.f32 %v497, %v584
    %v593 = vsub.f32 %v525, %v585
    %v594 = vsub.f32 %v553, %v586
    %v595 = vmul.f32 %v587, %v587
    %v596 = vmul.f32 %v588, %v588
    %v597 = vmul.f32 %v589, %v589
    %v598 = vmul.f32 %v590, %v590
    %v599 = vmul.f32 %v591, %v591
    %v600 = vmul.f32 %v592, %v592
    %v601 = vmul.f32 %v593, %v593
    %v602 = vmul.f32 %v594, %v594
    %v603 = vadd.f32 %v595, %v599
    %v604 = vrot.slane %v603, 4
    %v605 = vadd.f32 %v603, %v604
    %v606 = vrot.slane %v605, 2
    %v607 = vadd.f32 %v605, %v606
    %v608 = vrot.slane %v607, 1
    %v609 = vadd.f32 %v607, %v608
    %v610 = vadd.f32 %v596, %v600
    %v611 = vrot.slane %v610, 4
    %v612 = vadd.f32 %v610, %v611
    %v613 = vrot.slane %v612, 2
    %v614 = vadd.f32 %v612, %v613
    %v615 = vrot.slane %v614, 1
    %v616 = vadd.f32 %v614, %v615
    %v617 = vadd.f32 %v597, %v601
    %v618 = vrot.slane %v617, 4
    %v619 = vadd.f32 %v617, %v618
    %v620 = vrot.slane %v619, 2
    %v621 = vadd.f32 %v619, %v620
    %v622 = vrot.slane %v621, 1
    %v623 = vadd.f32 %v621, %v622
    %v624 = vadd.f32 %v598, %v602
    %v625 = vrot.slane %v624, 4
    %v626 = vadd.f32 %v624, %v625
    %v627 = vrot.slane %v626, 2
    %v628 = vadd.f32 %v626, %v627
    %v629 = vrot.slane %v628, 1
    %v630 = vadd.f32 %v628, %v629
    %v631 = vmul.f32 %v609, 0.0625
    %v632 = vmul.f32 %v616, 0.0625
    %v633 = vmul.f32 %v623, 0.0625
    %v634 = vmul.f32 %v630, 0.0625
    %v635 = vld [vmem:[%s3] sm:$0xf]
    %v636 = vadd.f32 %v631, 1e-05
    %v637 = vadd.f32 %v632, 1e-05
    %v638 = vadd.f32 %v633, 1e-05
    %v639 = vadd.f32 %v634, 1e-05
    %v640 = vrsqrt.pop %v636
    %v641 = vmul.f32 %v640, %v636
    %v642 = vmul.f32 %v641, %v640
    %v643 = vmul.f32 0.5, %v642
    %v644 = vsub.f32 1.5, %v643
    %v645 = vmul.f32 %v640, %v644
    %vm646 = vweird.f32 %v636
    %vm647 = vweird.f32 %v640
    %vm648 = vmor %vm646, %vm647
    %v649 = vsel %vm648, %v640, %v645
    %v650 = vrsqrt.pop %v637
    %v651 = vmul.f32 %v650, %v637
    %v652 = vmul.f32 %v651, %v650
    %v653 = vmul.f32 0.5, %v652
    %v654 = vsub.f32 1.5, %v653
    %v655 = vmul.f32 %v650, %v654
    %vm656 = vweird.f32 %v637
    %vm657 = vweird.f32 %v650
    %vm658 = vmor %vm656, %vm657
    %v659 = vsel %vm658, %v650, %v655
    %v660 = vrsqrt.pop %v638
    %v661 = vmul.f32 %v660, %v638
    %v662 = vmul.f32 %v661, %v660
    %v663 = vmul.f32 0.5, %v662
    %v664 = vsub.f32 1.5, %v663
    %v665 = vmul.f32 %v660, %v664
    %vm666 = vweird.f32 %v638
    %vm667 = vweird.f32 %v660
    %vm668 = vmor %vm666, %vm667
    %v669 = vsel %vm668, %v660, %v665
    %v670 = vrsqrt.pop %v639
    %v671 = vmul.f32 %v670, %v639
    %v672 = vmul.f32 %v671, %v670
    %v673 = vmul.f32 0.5, %v672
    %v674 = vsub.f32 1.5, %v673
    %v675 = vmul.f32 %v670, %v674
    %vm676 = vweird.f32 %v639
    %vm677 = vweird.f32 %v670
    %vm678 = vmor %vm676, %vm677
    %v679 = vsel %vm678, %v670, %v675
    %v684 = vrot.slane %v659, 7
    %v685 = vrot.slane %v669, 6
    %v686 = vrot.slane %v679, 5
    %vm687 = vcmask 1040384
    %v688 = vsel %vm687, %v649, %v684
    %vm689 = vcmask 1042434
    %v690 = vsel %vm689, %v685, %v686
    %vm691 = vcmask 1041408
    %v692 = vsel %vm691, %v688, %v690
    %v694 = vmul.f32 %v635, %v692
    %v695 = vld [vmem:[%s4] sm:$0xf]
    %v697 = vperm.slane %v694, 0
    %v698 = vperm.slane %v694, 1
    %v699 = vperm.slane %v694, 2
    %v700 = vperm.slane %v694, 3
    %v705 = vmul.f32 %v583, %v697
    %v706 = vmul.f32 %v584, %v698
    %v707 = vmul.f32 %v585, %v699
    %v708 = vmul.f32 %v586, %v700
    %v713 = vrot.slane %v706, 7
    %v714 = vrot.slane %v707, 6
    %v715 = vrot.slane %v708, 5
    %v716 = vsel %vm687, %v705, %v713
    %v717 = vsel %vm689, %v714, %v715
    %v718 = vsel %vm691, %v716, %v717
    %v720 = vsub.f32 %v695, %v718
    %v721 = vmul.f32 %v467, %v697
    %v722 = vmul.f32 %v495, %v698
    %v723 = vmul.f32 %v523, %v699
    %v724 = vmul.f32 %v551, %v700
    %v725 = vmul.f32 %v469, %v697
    %v726 = vmul.f32 %v497, %v698
    %v727 = vmul.f32 %v525, %v699
    %v728 = vmul.f32 %v553, %v700
    %v730 = vperm.slane %v720, 0
    %v731 = vperm.slane %v720, 1
    %v732 = vperm.slane %v720, 2
    %v733 = vperm.slane %v720, 3
    %v738 = vadd.f32 %v721, %v730
    %v739 = vadd.f32 %v722, %v731
    %v740 = vadd.f32 %v723, %v732
    %v741 = vadd.f32 %v724, %v733
    %v742 = vadd.f32 %v725, %v730
    %v743 = vadd.f32 %v726, %v731
    %v744 = vadd.f32 %v727, %v732
    %v745 = vadd.f32 %v728, %v733
    %v746 = vxor.u32 %v738, 2147483648
    %v747 = vxor.u32 %v739, 2147483648
    %v748 = vxor.u32 %v740, 2147483648
    %v749 = vxor.u32 %v741, 2147483648
    %v750 = vxor.u32 %v742, 2147483648
    %v751 = vxor.u32 %v743, 2147483648
    %v752 = vxor.u32 %v744, 2147483648
    %v753 = vxor.u32 %v745, 2147483648
    %v754 = vmul.f32 %v746, 1.442695
    %v755 = vpow.pop %v754
    %v756 = vmul.f32 %v747, 1.442695
    %v757 = vpow.pop %v756
    %v758 = vmul.f32 %v748, 1.442695
    %v759 = vpow.pop %v758
    %v760 = vmul.f32 %v749, 1.442695
    %v761 = vpow.pop %v760
    %v762 = vmul.f32 %v750, 1.442695
    %v763 = vpow.pop %v762
    %v764 = vmul.f32 %v751, 1.442695
    %v765 = vpow.pop %v764
    %v766 = vmul.f32 %v752, 1.442695
    %v767 = vpow.pop %v766
    %v768 = vmul.f32 %v753, 1.442695
    %v769 = vpow.pop %v768
    %v770 = vadd.f32 %v755, 1.0
    %v771 = vadd.f32 %v757, 1.0
    %v772 = vadd.f32 %v759, 1.0
    %v773 = vadd.f32 %v761, 1.0
    %v774 = vadd.f32 %v763, 1.0
    %v775 = vadd.f32 %v765, 1.0
    %v776 = vadd.f32 %v767, 1.0
    %v777 = vadd.f32 %v769, 1.0
    %v778 = vrcp.pop %v770
    %v779 = vmul.f32 %v770, %v778
    %v780 = vsub.f32 1.0, %v779
    %v781 = vmul.f32 %v778, %v780
    %v782 = vadd.f32 %v778, %v781
    %vm783 = vweird.f32 %v770
    %vm784 = vweird.f32 %v778
    %vm785 = vmor %vm783, %vm784
    %v786 = vsel %vm785, %v778, %v782
    %v787 = vand.u32 2147483647, %v770
    %vm788 = vcmp.eq.f32.partialorder %v787, 8.507059e+37
    %v789 = vand.u32 %v770, 2147483648
    %v790 = vor.u32 1.1754944e-38, %v789
    %v791 = vsel %vm788, %v790, %v786
    %v792 = vmul.f32 1.0, %v791
    %v793 = vrcp.pop %v771
    %v794 = vmul.f32 %v771, %v793
    %v795 = vsub.f32 1.0, %v794
    %v796 = vmul.f32 %v793, %v795
    %v797 = vadd.f32 %v793, %v796
    %vm798 = vweird.f32 %v771
    %vm799 = vweird.f32 %v793
    %vm800 = vmor %vm798, %vm799
    %v801 = vsel %vm800, %v793, %v797
    %v802 = vand.u32 2147483647, %v771
    %vm803 = vcmp.eq.f32.partialorder %v802, 8.507059e+37
    %v804 = vand.u32 %v771, 2147483648
    %v805 = vor.u32 1.1754944e-38, %v804
    %v806 = vsel %vm803, %v805, %v801
    %v807 = vmul.f32 1.0, %v806
    %v808 = vrcp.pop %v772
    %v809 = vmul.f32 %v772, %v808
    %v810 = vsub.f32 1.0, %v809
    %v811 = vmul.f32 %v808, %v810
    %v812 = vadd.f32 %v808, %v811
    %vm813 = vweird.f32 %v772
    %vm814 = vweird.f32 %v808
    %vm815 = vmor %vm813, %vm814
    %v816 = vsel %vm815, %v808, %v812
    %v817 = vand.u32 2147483647, %v772
    %vm818 = vcmp.eq.f32.partialorder %v817, 8.507059e+37
    %v819 = vand.u32 %v772, 2147483648
    %v820 = vor.u32 1.1754944e-38, %v819
    %v821 = vsel %vm818, %v820, %v816
    %v822 = vmul.f32 1.0, %v821
    %v823 = vrcp.pop %v773
    %v824 = vmul.f32 %v773, %v823
    %v825 = vsub.f32 1.0, %v824
    %v826 = vmul.f32 %v823, %v825
    %v827 = vadd.f32 %v823, %v826
    %vm828 = vweird.f32 %v773
    %vm829 = vweird.f32 %v823
    %vm830 = vmor %vm828, %vm829
    %v831 = vsel %vm830, %v823, %v827
    %v832 = vand.u32 2147483647, %v773
    %vm833 = vcmp.eq.f32.partialorder %v832, 8.507059e+37
    %v834 = vand.u32 %v773, 2147483648
    %v835 = vor.u32 1.1754944e-38, %v834
    %v836 = vsel %vm833, %v835, %v831
    %v837 = vmul.f32 1.0, %v836
    %v838 = vrcp.pop %v774
    %v839 = vmul.f32 %v774, %v838
    %v840 = vsub.f32 1.0, %v839
    %v841 = vmul.f32 %v838, %v840
    %v842 = vadd.f32 %v838, %v841
    %vm843 = vweird.f32 %v774
    %vm844 = vweird.f32 %v838
    %vm845 = vmor %vm843, %vm844
    %v846 = vsel %vm845, %v838, %v842
    %v847 = vand.u32 2147483647, %v774
    %vm848 = vcmp.eq.f32.partialorder %v847, 8.507059e+37
    %v849 = vand.u32 %v774, 2147483648
    %v850 = vor.u32 1.1754944e-38, %v849
    %v851 = vsel %vm848, %v850, %v846
    %v852 = vmul.f32 1.0, %v851
    %v853 = vrcp.pop %v775
    %v854 = vmul.f32 %v775, %v853
    %v855 = vsub.f32 1.0, %v854
    %v856 = vmul.f32 %v853, %v855
    %v857 = vadd.f32 %v853, %v856
    %vm858 = vweird.f32 %v775
    %vm859 = vweird.f32 %v853
    %vm860 = vmor %vm858, %vm859
    %v861 = vsel %vm860, %v853, %v857
    %v862 = vand.u32 2147483647, %v775
    %vm863 = vcmp.eq.f32.partialorder %v862, 8.507059e+37
    %v864 = vand.u32 %v775, 2147483648
    %v865 = vor.u32 1.1754944e-38, %v864
    %v866 = vsel %vm863, %v865, %v861
    %v867 = vmul.f32 1.0, %v866
    %v868 = vrcp.pop %v776
    %v869 = vmul.f32 %v776, %v868
    %v870 = vsub.f32 1.0, %v869
    %v871 = vmul.f32 %v868, %v870
    %v872 = vadd.f32 %v868, %v871
    %vm873 = vweird.f32 %v776
    %vm874 = vweird.f32 %v868
    %vm875 = vmor %vm873, %vm874
    %v876 = vsel %vm875, %v868, %v872
    %v877 = vand.u32 2147483647, %v776
    %vm878 = vcmp.eq.f32.partialorder %v877, 8.507059e+37
    %v879 = vand.u32 %v776, 2147483648
    %v880 = vor.u32 1.1754944e-38, %v879
    %v881 = vsel %vm878, %v880, %v876
    %v882 = vmul.f32 1.0, %v881
    %v883 = vrcp.pop %v777
    %v884 = vmul.f32 %v777, %v883
    %v885 = vsub.f32 1.0, %v884
    %v886 = vmul.f32 %v883, %v885
    %v887 = vadd.f32 %v883, %v886
    %vm888 = vweird.f32 %v777
    %vm889 = vweird.f32 %v883
    %vm890 = vmor %vm888, %vm889
    %v891 = vsel %vm890, %v883, %v887
    %v892 = vand.u32 2147483647, %v777
    %vm893 = vcmp.eq.f32.partialorder %v892, 8.507059e+37
    %v894 = vand.u32 %v777, 2147483648
    %v895 = vor.u32 1.1754944e-38, %v894
    %v896 = vsel %vm893, %v895, %v891
    %v897 = vmul.f32 1.0, %v896
    %v898 = vmul.f32 %v738, %v792
    %v899 = vmul.f32 %v739, %v807
    %v900 = vmul.f32 %v740, %v822
    %v901 = vmul.f32 %v741, %v837
    %v902 = vmul.f32 %v742, %v852
    %v903 = vmul.f32 %v743, %v867
    %v904 = vmul.f32 %v744, %v882
    %v905 = vmul.f32 %v745, %v897
    %906 = vst [vmem:[#allocation5] sm:$0xff] %v898
    %907 = vst [vmem:[#allocation5 + $0x8] sm:$0xff] %v899
    %908 = vst [vmem:[#allocation5 + $0x10] sm:$0xff] %v900
    %909 = vst [vmem:[#allocation5 + $0x18] sm:$0xff] %v901
    %910 = vst [vmem:[#allocation5 + $0x20] sm:$0xff] %v902
    %911 = vst [vmem:[#allocation5 + $0x28] sm:$0xff] %v903
    %912 = vst [vmem:[#allocation5 + $0x30] sm:$0xff] %v904
    %913 = vst [vmem:[#allocation5 + $0x38] sm:$0xff] %v905
    // Predicated region
    $region26: #{fc_block_forward.1} parent=1 // pred_check
      _
    $region27: #{fc_block_forward.1} parent=1 // pred_check_branch
      %915 = sbr.rel (0) target = $region29
    $region28: #{fc_block_forward.1} parent=1 // pred_region
      %917 = vsyncadd [#allocation4], 0
      %s918 = sshll.u32 [#allocation5], 4
      %s919 = int_to_ptr.vmem [resolvable:$true] %s918
      %s920 = sshll.u32 %s5, 4
      %s921 = int_to_ptr.hbm [resolvable:$true] %s920
      %926 = dma.vmem_to_hbm [thread:$0]  %s919, 1024, %s921, [#allocation4], 512, 512, 32
    $region29: #{fc_block_forward.1} parent=1 // pred_fallthru
      _
    // Predicated region
    $region30: #{fc_block_forward.1} parent=1 // pred_check
      _
    $region31: #{fc_block_forward.1} parent=1 // pred_check_branch
      %928 = sbr.rel (0) target = $region33
    $region32: #{fc_block_forward.1} parent=1 // pred_region
      %930 = dma.done [#allocation4], 1024
    $region33: #{fc_block_forward.1} parent=1 // pred_fallthru
      _
    %931 = vsyncpa [#allocation3], 1
    %932 = vsyncpa [#allocation4], 1

</llo_original>
